<compile_context>
chip_gen: v5e
topology: v5e:2x2
jax: 0.10.0
libtpu: 0.0.40
codegen_flags: <defaults>
</compile_context>

<pallas_src>
import jax
import jax.numpy as jnp
from jax.experimental import pallas as pl
from jax.experimental.pallas import tpu as pltpu

LANE = 128
SUB = 16  # sublane granularity safe for bf16 outputs


def _round_up(n, m):
    return -(-n // m) * m


# --------------------------------------------------------------------------- #
# Kernels
# --------------------------------------------------------------------------- #
def _dqn_kernel(x_ref, w1_ref, b1_ref, w2_ref, b2_ref, w3_ref, b3_ref,
                a1_ref, a2_ref, out_ref):
    """Fused 3-layer MLP tile, writing bf16 true-width activations to HBM."""
    x = x_ref[...].astype(jnp.bfloat16)                       # (TB, IN)

    h1 = jnp.dot(x, w1_ref[...], preferred_element_type=jnp.float32)
    h1 = jnp.maximum(h1 + b1_ref[...], 0.0)                   # (TB, H_P) f32
    a1_ref[...] = h1[:, :a1_ref.shape[1]].astype(a1_ref.dtype)

    h2 = jnp.dot(h1.astype(jnp.bfloat16), w2_ref[...],
                 preferred_element_type=jnp.float32)
    h2 = jnp.maximum(h2 + b2_ref[...], 0.0)
    a2_ref[...] = h2[:, :a2_ref.shape[1]].astype(a2_ref.dtype)

    out = jnp.dot(h2.astype(jnp.bfloat16), w3_ref[...],
                  preferred_element_type=jnp.float32)
    out_ref[...] = (out + b3_ref[...]).astype(out_ref.dtype)


def _dqn_kernel_q_only(x_ref, w1_ref, b1_ref, w2_ref, b2_ref, w3_ref, b3_ref,
                       out_ref):
    """Same math, no intermediate-activation HBM writebacks (inference path)."""
    x = x_ref[...].astype(jnp.bfloat16)
    h1 = jnp.dot(x, w1_ref[...], preferred_element_type=jnp.float32)
    h1 = jnp.maximum(h1 + b1_ref[...], 0.0)
    h2 = jnp.dot(h1.astype(jnp.bfloat16), w2_ref[...],
                 preferred_element_type=jnp.float32)
    h2 = jnp.maximum(h2 + b2_ref[...], 0.0)
    out = jnp.dot(h2.astype(jnp.bfloat16), w3_ref[...],
                  preferred_element_type=jnp.float32)
    out_ref[...] = (out + b3_ref[...]).astype(out_ref.dtype)


# --------------------------------------------------------------------------- #
# Parameter handling
# --------------------------------------------------------------------------- #
def init_params(key, input_size, output_size, hidden_size):
    """f32 master weights, matching nn.Linear's U(-1/sqrt(fan_in), +1/sqrt(fan_in))."""
    ks = jax.random.split(key, 6)

    def linear(kw, kb, fan_in, fan_out):
        bound = 1.0 / jnp.sqrt(jnp.float32(fan_in))
        w = jax.random.uniform(kw, (fan_in, fan_out), jnp.float32, -bound, bound)
        b = jax.random.uniform(kb, (1, fan_out), jnp.float32, -bound, bound)
        return w, b

    w1, b1 = linear(ks[0], ks[1], input_size, hidden_size)
    w2, b2 = linear(ks[2], ks[3], hidden_size, hidden_size)
    w3, b3 = linear(ks[4], ks[5], hidden_size, output_size)
    return (w1, b1, w2, b2, w3, b3)


def prepare_params(params):
    """Lane-pad hidden/output feature axes to 128; weights -> bf16.
    w1's K axis stays at input_size (layer-1 contracts the true input width)."""
    w1, b1, w2, b2, w3, b3 = params
    h_p = _round_up(w1.shape[1], LANE)
    out_p = _round_up(w3.shape[1], LANE)

    def pad2(a, r, c):
        return jnp.pad(a, ((0, r - a.shape[0]), (0, c - a.shape[1])))

    return (pad2(w1, w1.shape[0], h_p).astype(jnp.bfloat16), pad2(b1, 1, h_p),
            pad2(w2, h_p, h_p).astype(jnp.bfloat16), pad2(b2, 1, h_p),
            pad2(w3, h_p, out_p).astype(jnp.bfloat16), pad2(b3, 1, out_p))


# --------------------------------------------------------------------------- #
# Batch tiling: minimize padding, guarantee grid >= 2 for B >= 16 (v7x cores)
# --------------------------------------------------------------------------- #
def _choose_batch_tiling(B, batch_tile):
    batch_tile = max(SUB, batch_tile)
    if B >= 16:
        tb_cap = min(batch_tile, _round_up(-(-B // 2), SUB))
    else:
        tb_cap = _round_up(B, SUB)
    n_tiles = max(1, -(-B // tb_cap))
    tb = _round_up(-(-B // n_tiles), SUB)
    b_pad = tb * n_tiles
    return tb, b_pad, n_tiles


# --------------------------------------------------------------------------- #
# Forward wrapper
# --------------------------------------------------------------------------- #
def dqn_forward(x, padded_params, *, hidden_size, output_size,
                return_activations=True, batch_tile=2048):
    """Mirrors DQN.forward: returns (q_values, [relu(fc1), relu(fc2), fc3]).
    For inference / target-net evaluation pass return_activations=False (hot
    path: skips both large HBM writebacks)."""
    w1, b1, w2, b2, w3, b3 = padded_params
    B, in_features = x.shape
    h_p = w2.shape[0]
    out_p = w3.shape[1]
    assert w1.shape[0] == in_features, "w1 K-axis must equal input feature width"

    tb, b_pad, n_tiles = _choose_batch_tiling(B, batch_tile)
    grid = (n_tiles,)

    # Only a (cheap) batch-row pad when needed; feature axis stays at true width,
    # so there is no padded-input HBM round trip.
    xk = x if b_pad == B else jnp.pad(x, ((0, b_pad - B), (0, 0)))

    # Weights/biases: constant index_map -> one-time HBM->VMEM load, VMEM-resident.
    const = lambda shape: pl.BlockSpec(shape, lambda i: (0, 0))
    in_specs = [
        pl.BlockSpec((tb, in_features), lambda i: (i, 0)),   # x: streamed batch tiles
        const(w1.shape), const(b1.shape),                    # fc1
        const(w2.shape), const(b2.shape),                    # fc2
        const(w3.shape), const(b3.shape),                    # fc3
    ]

    flops = 2 * b_pad * (in_features * h_p + h_p * h_p + h_p * out_p)
    bytes_accessed = (
        xk.size * x.dtype.itemsize
        + (w1.size + w2.size + w3.size) * 2
        + (b1.size + b2.size + b3.size) * 4
        + b_pad * out_p * 4
        + (2 * b_pad * hidden_size * 2 if return_activations else 0))
    cost = pl.CostEstimate(flops=flops, transcendentals=0,
                           bytes_accessed=bytes_accessed)
    cparams = pltpu.CompilerParams(dimension_semantics=("parallel",))

    if return_activations:
        a1, a2, outp = pl.pallas_call(
            _dqn_kernel,
            out_shape=(
                jax.ShapeDtypeStruct((b_pad, hidden_size), jnp.bfloat16),
                jax.ShapeDtypeStruct((b_pad, hidden_size), jnp.bfloat16),
                jax.ShapeDtypeStruct((b_pad, out_p), jnp.float32),
            ),
            grid=grid,
            in_specs=in_specs,
            out_specs=(
                pl.BlockSpec((tb, hidden_size), lambda i: (i, 0)),
                pl.BlockSpec((tb, hidden_size), lambda i: (i, 0)),
                pl.BlockSpec((tb, out_p), lambda i: (i, 0)),
            ),
            compiler_params=cparams,
            cost_estimate=cost,
        )(xk, w1, b1, w2, b2, w3, b3)
        q = outp[:B, :output_size]
        # Activations are bf16 (half the writeback traffic); cast outside if a
        # caller truly needs f32.
        activations = [a1[:B], a2[:B], q]
        return q, activations

    outp = pl.pallas_call(
        _dqn_kernel_q_only,
        out_shape=jax.ShapeDtypeStruct((b_pad, out_p), jnp.float32),
        grid=grid,
        in_specs=in_specs,
        out_specs=pl.BlockSpec((tb, out_p), lambda i: (i, 0)),
        compiler_params=cparams,
        cost_estimate=cost,
    )(xk, w1, b1, w2, b2, w3, b3)
    return outp[:B, :output_size], None


# --------------------------------------------------------------------------- #
# Demo / self-test
# --------------------------------------------------------------------------- #
if __name__ == "__main__":
    INPUT_SIZE = 16    # state dimension
    OUTPUT_SIZE = 4    # number of actions
    HIDDEN_SIZE = 32
    BATCH = 8

    key = jax.random.PRNGKey(0)
    k_params, k_x = jax.random.split(key)

    params = init_params(k_params, INPUT_SIZE, OUTPUT_SIZE, HIDDEN_SIZE)
    padded = prepare_params(params)
    x = jax.random.normal(k_x, (BATCH, INPUT_SIZE), jnp.float32)

    # Full path (matches the torch module: keeps the per-layer activations).
    q_values, activations = dqn_forward(
        x, padded, hidden_size=HIDDEN_SIZE, output_size=OUTPUT_SIZE,
        return_activations=True)
    jax.block_until_ready(q_values)
    jax.block_until_ready(activations)

    # Q-only path (inference / target-net evaluation, no activation writebacks).
    q_fast, _ = dqn_forward(
        x, padded, hidden_size=HIDDEN_SIZE, output_size=OUTPUT_SIZE,
        return_activations=False)
    jax.block_until_ready(q_fast)

    # Reference 1: same bf16-matmul / f32-accumulate math as the kernel.
    w1, b1, w2, b2, w3, b3 = params
    xb = x.astype(jnp.bfloat16)
    r1 = jnp.maximum(jnp.dot(xb, w1.astype(jnp.bfloat16),
                             preferred_element_type=jnp.float32) + b1, 0.0)
    r2 = jnp.maximum(jnp.dot(r1.astype(jnp.bfloat16), w2.astype(jnp.bfloat16),
                             preferred_element_type=jnp.float32) + b2, 0.0)
    ref_bf16 = jnp.dot(r2.astype(jnp.bfloat16), w3.astype(jnp.bfloat16),
                       preferred_element_type=jnp.float32) + b3

    # Reference 2: full-f32 torch-equivalent math (looser tolerance: bf16 inputs).
    f1 = jnp.maximum(x @ w1 + b1, 0.0)
    f2 = jnp.maximum(f1 @ w2 + b2, 0.0)
    ref_f32 = f2 @ w3 + b3

    assert q_values.shape == (BATCH, OUTPUT_SIZE)
    assert activations[0].shape == (BATCH, HIDDEN_SIZE)
    assert activations[1].shape == (BATCH, HIDDEN_SIZE)
    assert activations[0].dtype == jnp.bfloat16
    assert jnp.allclose(q_values, ref_bf16, atol=2e-3, rtol=2e-3), \
        "mismatch vs bf16-mirrored reference"
    assert jnp.allclose(q_values, ref_f32, atol=5e-2, rtol=5e-2), \
        "mismatch vs f32 reference"
    assert jnp.allclose(activations[0].astype(jnp.float32), r1,
                        atol=3e-2, rtol=3e-2)
    assert jnp.allclose(activations[1].astype(jnp.float32), r2,
                        atol=3e-2, rtol=3e-2)
    assert jnp.allclose(q_fast, q_values, atol=1e-6, rtol=1e-6)

    print("KERNEL_OK")
</pallas_src>

<mosaic_0001>
module attributes {stable_mosaic.version = 11 : i64} {
  func.func @_dqn_kernel(%arg0: i32, %arg1: memref<16x16xf32, #tpu.memory_space<vmem>>, %arg2: memref<16x128xbf16, #tpu.memory_space<vmem>>, %arg3: memref<1x128xf32, #tpu.memory_space<vmem>>, %arg4: memref<128x128xbf16, #tpu.memory_space<vmem>>, %arg5: memref<1x128xf32, #tpu.memory_space<vmem>>, %arg6: memref<128x128xbf16, #tpu.memory_space<vmem>>, %arg7: memref<1x128xf32, #tpu.memory_space<vmem>>, %arg8: memref<16x32xbf16, #tpu.memory_space<vmem>>, %arg9: memref<16x32xbf16, #tpu.memory_space<vmem>>, %arg10: memref<16x128xf32, #tpu.memory_space<vmem>>) attributes {dimension_semantics = [#tpu.dimension_semantics<parallel>], iteration_bounds = array<i64: 1>, scalar_prefetch = 0 : i64, scratch_operands = 0 : i64, tpu.core_type = #tpu.core_type<tc>, window_params = [{transform_indices = @transform_0, window_bounds = array<i64: 16, 16>}, {pipeline_mode = #tpu.pipeline_mode<synchronous>, transform_indices = @transform_1, window_bounds = array<i64: 16, 128>}, {pipeline_mode = #tpu.pipeline_mode<synchronous>, transform_indices = @transform_2, window_bounds = array<i64: 1, 128>}, {pipeline_mode = #tpu.pipeline_mode<synchronous>, transform_indices = @transform_3, window_bounds = array<i64: 128, 128>}, {pipeline_mode = #tpu.pipeline_mode<synchronous>, transform_indices = @transform_4, window_bounds = array<i64: 1, 128>}, {pipeline_mode = #tpu.pipeline_mode<synchronous>, transform_indices = @transform_5, window_bounds = array<i64: 128, 128>}, {pipeline_mode = #tpu.pipeline_mode<synchronous>, transform_indices = @transform_6, window_bounds = array<i64: 1, 128>}, {transform_indices = @transform_7, window_bounds = array<i64: 16, 32>}, {transform_indices = @transform_8, window_bounds = array<i64: 16, 32>}, {transform_indices = @transform_9, window_bounds = array<i64: 16, 128>}]} {
    %c0 = arith.constant 0 : index
    %c0_0 = arith.constant 0 : index
    %0 = vector.load %arg1[%c0, %c0_0] : memref<16x16xf32, #tpu.memory_space<vmem>>, vector<16x16xf32>
    %1 = arith.truncf %0 : vector<16x16xf32> to vector<16x16xbf16>
    %c0_1 = arith.constant 0 : index
    %c0_2 = arith.constant 0 : index
    %2 = vector.load %arg2[%c0_1, %c0_2] : memref<16x128xbf16, #tpu.memory_space<vmem>>, vector<16x128xbf16>
    %cst = arith.constant dense<0.000000e+00> : vector<16x128xf32>
    %3 = tpu.matmul %1, %2, %cst {dimension_numbers = #tpu.dot_dimension_numbers<[1], [0], [0], [1], [0, 0, 1, 1], [], []>} : vector<16x16xbf16>, vector<16x128xbf16>, vector<16x128xf32> -> vector<16x128xf32>
    %c0_3 = arith.constant 0 : index
    %c0_4 = arith.constant 0 : index
    %4 = vector.load %arg3[%c0_3, %c0_4] : memref<1x128xf32, #tpu.memory_space<vmem>>, vector<1x128xf32>
    %5 = vector.broadcast %4 : vector<1x128xf32> to vector<16x128xf32>
    %6 = arith.addf %3, %5 : vector<16x128xf32>
    %cst_5 = arith.constant 0.000000e+00 : f32
    %7 = vector.broadcast %cst_5 : f32 to vector<16x128xf32>
    %8 = arith.maximumf %6, %7 : vector<16x128xf32>
    %9 = vector.extract_strided_slice %8 {offsets = [0, 0], sizes = [16, 32], strides = [1, 1]} : vector<16x128xf32> to vector<16x32xf32>
    %10 = arith.truncf %9 : vector<16x32xf32> to vector<16x32xbf16>
    %c0_6 = arith.constant 0 : index
    %c0_7 = arith.constant 0 : index
    %11 = vector.load %arg8[%c0_6, %c0_7] : memref<16x32xbf16, #tpu.memory_space<vmem>>, vector<16x32xbf16>
    tpu.vector_store %arg8[%c0_6, %c0_7], %10 {strides = array<i32>} : memref<16x32xbf16, #tpu.memory_space<vmem>>, vector<16x32xbf16>,
    %12 = arith.truncf %8 : vector<16x128xf32> to vector<16x128xbf16>
    %c0_8 = arith.constant 0 : index
    %c0_9 = arith.constant 0 : index
    %13 = vector.load %arg4[%c0_8, %c0_9] : memref<128x128xbf16, #tpu.memory_space<vmem>>, vector<128x128xbf16>
    %cst_10 = arith.constant dense<0.000000e+00> : vector<16x128xf32>
    %14 = tpu.matmul %12, %13, %cst_10 {dimension_numbers = #tpu.dot_dimension_numbers<[1], [0], [0], [1], [0, 0, 1, 1], [], []>} : vector<16x128xbf16>, vector<128x128xbf16>, vector<16x128xf32> -> vector<16x128xf32>
    %c0_11 = arith.constant 0 : index
    %c0_12 = arith.constant 0 : index
    %15 = vector.load %arg5[%c0_11, %c0_12] : memref<1x128xf32, #tpu.memory_space<vmem>>, vector<1x128xf32>
    %16 = vector.broadcast %15 : vector<1x128xf32> to vector<16x128xf32>
    %17 = arith.addf %14, %16 : vector<16x128xf32>
    %cst_13 = arith.constant 0.000000e+00 : f32
    %18 = vector.broadcast %cst_13 : f32 to vector<16x128xf32>
    %19 = arith.maximumf %17, %18 : vector<16x128xf32>
    %20 = vector.extract_strided_slice %19 {offsets = [0, 0], sizes = [16, 32], strides = [1, 1]} : vector<16x128xf32> to vector<16x32xf32>
    %21 = arith.truncf %20 : vector<16x32xf32> to vector<16x32xbf16>
    %c0_14 = arith.constant 0 : index
    %c0_15 = arith.constant 0 : index
    %22 = vector.load %arg9[%c0_14, %c0_15] : memref<16x32xbf16, #tpu.memory_space<vmem>>, vector<16x32xbf16>
    tpu.vector_store %arg9[%c0_14, %c0_15], %21 {strides = array<i32>} : memref<16x32xbf16, #tpu.memory_space<vmem>>, vector<16x32xbf16>,
    %23 = arith.truncf %19 : vector<16x128xf32> to vector<16x128xbf16>
    %c0_16 = arith.constant 0 : index
    %c0_17 = arith.constant 0 : index
    %24 = vector.load %arg6[%c0_16, %c0_17] : memref<128x128xbf16, #tpu.memory_space<vmem>>, vector<128x128xbf16>
    %cst_18 = arith.constant dense<0.000000e+00> : vector<16x128xf32>
    %25 = tpu.matmul %23, %24, %cst_18 {dimension_numbers = #tpu.dot_dimension_numbers<[1], [0], [0], [1], [0, 0, 1, 1], [], []>} : vector<16x128xbf16>, vector<128x128xbf16>, vector<16x128xf32> -> vector<16x128xf32>
    %c0_19 = arith.constant 0 : index
    %c0_20 = arith.constant 0 : index
    %26 = vector.load %arg7[%c0_19, %c0_20] : memref<1x128xf32, #tpu.memory_space<vmem>>, vector<1x128xf32>
    %27 = vector.broadcast %26 : vector<1x128xf32> to vector<16x128xf32>
    %28 = arith.addf %25, %27 : vector<16x128xf32>
    %c0_21 = arith.constant 0 : index
    %c0_22 = arith.constant 0 : index
    %29 = vector.load %arg10[%c0_21, %c0_22] : memref<16x128xf32, #tpu.memory_space<vmem>>, vector<16x128xf32>
    tpu.vector_store %arg10[%c0_21, %c0_22], %28 {strides = array<i32>} : memref<16x128xf32, #tpu.memory_space<vmem>>, vector<16x128xf32>,
    return
  }
  func.func @transform_0(%arg0: i32) -> (i32, i32) {
    %c0_i32 = arith.constant 0 : i32
    %c0_i32_0 = arith.constant 0 : i32
    return %arg0, %c0_i32 : i32, i32
  }
  func.func @transform_1(%arg0: i32) -> (i32, i32) {
    %c0_i32 = arith.constant 0 : i32
    %c0_i32_0 = arith.constant 0 : i32
    %c0_i32_1 = arith.constant 0 : i32
    return %c0_i32, %c0_i32_0 : i32, i32
  }
  func.func @transform_2(%arg0: i32) -> (i32, i32) {
    %c0_i32 = arith.constant 0 : i32
    %c0_i32_0 = arith.constant 0 : i32
    %c0_i32_1 = arith.constant 0 : i32
    return %c0_i32, %c0_i32_0 : i32, i32
  }
  func.func @transform_3(%arg0: i32) -> (i32, i32) {
    %c0_i32 = arith.constant 0 : i32
    %c0_i32_0 = arith.constant 0 : i32
    %c0_i32_1 = arith.constant 0 : i32
    return %c0_i32, %c0_i32_0 : i32, i32
  }
  func.func @transform_4(%arg0: i32) -> (i32, i32) {
    %c0_i32 = arith.constant 0 : i32
    %c0_i32_0 = arith.constant 0 : i32
    %c0_i32_1 = arith.constant 0 : i32
    return %c0_i32, %c0_i32_0 : i32, i32
  }
  func.func @transform_5(%arg0: i32) -> (i32, i32) {
    %c0_i32 = arith.constant 0 : i32
    %c0_i32_0 = arith.constant 0 : i32
    %c0_i32_1 = arith.constant 0 : i32
    return %c0_i32, %c0_i32_0 : i32, i32
  }
  func.func @transform_6(%arg0: i32) -> (i32, i32) {
    %c0_i32 = arith.constant 0 : i32
    %c0_i32_0 = arith.constant 0 : i32
    %c0_i32_1 = arith.constant 0 : i32
    return %c0_i32, %c0_i32_0 : i32, i32
  }
  func.func @transform_7(%arg0: i32) -> (i32, i32) {
    %c0_i32 = arith.constant 0 : i32
    %c0_i32_0 = arith.constant 0 : i32
    return %arg0, %c0_i32 : i32, i32
  }
  func.func @transform_8(%arg0: i32) -> (i32, i32) {
    %c0_i32 = arith.constant 0 : i32
    %c0_i32_0 = arith.constant 0 : i32
    return %arg0, %c0_i32 : i32, i32
  }
  func.func @transform_9(%arg0: i32) -> (i32, i32) {
    %c0_i32 = arith.constant 0 : i32
    %c0_i32_0 = arith.constant 0 : i32
    return %arg0, %c0_i32 : i32, i32
  }
}

</mosaic_0001>

<llo_original>
// kernel: tpu_custom_call.1
$region0: #{tpu_custom_call.1}
  #allocation0 [shape = 'u32[]', space=smem, size = 0x4, offset = 0x4, fixed_abs, tag = 'smem constant byte address 0x4 - core index']
  #allocation1 [shape = 'u32[72,128]{1,0:T(1,128)}', space=vmem, size = 0x9000, scoped, tag = 'internal scratch']
  %s0 = inlined_call_operand.hbm [shape: f32[16,16], index: 0, kind: input, shape index: {}]
  %s1 = inlined_call_operand.hbm [shape: bf16[16,128], index: 1, kind: input, shape index: {}]
  %s2 = inlined_call_operand.vmem [shape: f32[1,128], index: 2, kind: input, shape index: {}]
  %s3 = inlined_call_operand.hbm [shape: bf16[128,128], index: 3, kind: input, shape index: {}]
  %s4 = inlined_call_operand.vmem [shape: f32[1,128], index: 4, kind: input, shape index: {}]
  %s5 = inlined_call_operand.hbm [shape: bf16[128,128], index: 5, kind: input, shape index: {}]
  %s6 = inlined_call_operand.vmem [shape: f32[1,128], index: 6, kind: input, shape index: {}]
  %s7 = inlined_call_operand.hbm [shape: bf16[16,32], index: 7, kind: output, shape index: {0}]
  %s8 = inlined_call_operand.hbm [shape: bf16[16,32], index: 8, kind: output, shape index: {1}]
  %s9 = inlined_call_operand.hbm [shape: f32[16,128], index: 9, kind: output, shape index: {2}]
  %10 = xla_tuple %s7, %s8, %s9
  %s11 = sld [smem:[#allocation0]]
  $region70: #{tpu_custom_call.1} parent=0
    _
  %s13 = ssub.s32 1, %s11
  %s14 = scalar_select 0, %s13, %s11
  $region1: #{tpu_custom_call.1} parent=0
    #allocation2 [shape = 'u8[8192]{0}', space=vmem, size = 0x2000, scoped, tag = 'input window, operand 0, single buffered']
    #allocation3 [shape = 's32[1]{0}', space=sflag, size = 0x4, scoped, tag = 'scoped memory for tpu_custom_call.1']
    #allocation4 [shape = 's32[1]{0}', space=sflag, size = 0x4, scoped, tag = 'scoped memory for tpu_custom_call.1']
    #allocation5 [shape = 'u8[4096]{0}', space=vmem, size = 0x1000, scoped, tag = 'input window, operand 1, single buffered']
    #allocation6 [shape = 's32[1]{0}', space=sflag, size = 0x4, scoped, tag = 'scoped memory for tpu_custom_call.1']
    #allocation7 [shape = 'u8[32768]{0}', space=vmem, size = 0x8000, scoped, tag = 'input window, operand 3, single buffered']
    #allocation8 [shape = 'u8[32768]{0}', space=vmem, size = 0x8000, scoped, tag = 'input window, operand 5, single buffered']
    #allocation9 [shape = 's32[1]{0}', space=sflag, size = 0x4, scoped, tag = 'scoped memory for tpu_custom_call.1']
    #allocation10 [shape = 'u8[4096]{0}', space=vmem, size = 0x1000, scoped, tag = 'output window, operand 0, single buffered']
    #allocation11 [shape = 'u8[4096]{0}', space=vmem, size = 0x1000, scoped, tag = 'output window, operand 1, single buffered']
    #allocation12 [shape = 's32[1]{0}', space=sflag, size = 0x4, scoped, tag = 'scoped memory for tpu_custom_call.1']
    #allocation13 [shape = 'u8[8192]{0}', space=vmem, size = 0x2000, scoped, tag = 'output window, operand 2, single buffered']
    %15 = vsyncpa [#allocation3], 0
    %16 = vsyncpa [#allocation6], 0
    %17 = vsyncpa [#allocation9], 0
    %18 = vsyncpa [#allocation4], 0
    %19 = vsyncpa [#allocation12], 0
    // Predicated region
    $region2: #{tpu_custom_call.1} parent=1 // pred_check
      _
    $region3: #{tpu_custom_call.1} parent=1 // pred_check_branch
      %21 = sbr.rel (0) target = $region5
    $region4: #{tpu_custom_call.1} parent=1 // pred_region
      %23 = vsyncadd [#allocation3], 0
      %s24 = sshll.u32 %s0, 4
      %s25 = int_to_ptr.hbm [resolvable:$true] %s24
      %s26 = sshll.u32 [#allocation2], 4
      %s27 = int_to_ptr.vmem [resolvable:$true] %s26
      %32 = dma.hbm_to_vmem [thread:$0]  %s25, 256, %s27, [#allocation3], 128, 128, 8
    $region5: #{tpu_custom_call.1} parent=1 // pred_fallthru
      _
    // Predicated region
    $region6: #{tpu_custom_call.1} parent=1 // pred_check
      _
    $region7: #{tpu_custom_call.1} parent=1 // pred_check_branch
      %34 = sbr.rel (0) target = $region9
    $region8: #{tpu_custom_call.1} parent=1 // pred_region
      %36 = vsyncadd [#allocation6], 0
      %s37 = sshll.u32 %s1, 4
      %s38 = int_to_ptr.hbm [resolvable:$true] %s37
      %s39 = sshll.u32 [#allocation5], 4
      %s40 = int_to_ptr.vmem [resolvable:$true] %s39
      %45 = dma.hbm_to_vmem [thread:$0]  %s38, 128, %s40, [#allocation6], 64, 64, 4
    $region9: #{tpu_custom_call.1} parent=1 // pred_fallthru
      _
    // Predicated region
    $region10: #{tpu_custom_call.1} parent=1 // pred_check
      _
    $region11: #{tpu_custom_call.1} parent=1 // pred_check_branch
      %47 = sbr.rel (0) target = $region13
    $region12: #{tpu_custom_call.1} parent=1 // pred_region
      _
    $region13: #{tpu_custom_call.1} parent=1 // pred_fallthru
      _
    // Predicated region
    $region14: #{tpu_custom_call.1} parent=1 // pred_check
      _
    $region15: #{tpu_custom_call.1} parent=1 // pred_check_branch
      %49 = sbr.rel (0) target = $region17
    $region16: #{tpu_custom_call.1} parent=1 // pred_region
      %51 = vsyncadd [#allocation6], 0
      %s52 = sshll.u32 %s3, 4
      %s53 = int_to_ptr.hbm [resolvable:$true] %s52
      %s54 = sshll.u32 [#allocation7], 4
      %s55 = int_to_ptr.vmem [resolvable:$true] %s54
      %60 = dma.hbm_to_vmem [thread:$0]  %s53, 1024, %s55, [#allocation6], 64, 64, 4
    $region17: #{tpu_custom_call.1} parent=1 // pred_fallthru
      _
    // Predicated region
    $region18: #{tpu_custom_call.1} parent=1 // pred_check
      _
    $region19: #{tpu_custom_call.1} parent=1 // pred_check_branch
      %62 = sbr.rel (0) target = $region21
    $region20: #{tpu_custom_call.1} parent=1 // pred_region
      _
    $region21: #{tpu_custom_call.1} parent=1 // pred_fallthru
      _
    // Predicated region
    $region22: #{tpu_custom_call.1} parent=1 // pred_check
      _
    $region23: #{tpu_custom_call.1} parent=1 // pred_check_branch
      %64 = sbr.rel (0) target = $region25
    $region24: #{tpu_custom_call.1} parent=1 // pred_region
      %66 = vsyncadd [#allocation9], 0
      %s67 = sshll.u32 %s5, 4
      %s68 = int_to_ptr.hbm [resolvable:$true] %s67
      %s69 = sshll.u32 [#allocation8], 4
      %s70 = int_to_ptr.vmem [resolvable:$true] %s69
      %75 = dma.hbm_to_vmem [thread:$0]  %s68, 1024, %s70, [#allocation9], 64, 64, 4
    $region25: #{tpu_custom_call.1} parent=1 // pred_fallthru
      _
    // Predicated region
    $region26: #{tpu_custom_call.1} parent=1 // pred_check
      _
    $region27: #{tpu_custom_call.1} parent=1 // pred_check_branch
      %77 = sbr.rel (0) target = $region29
    $region28: #{tpu_custom_call.1} parent=1 // pred_region
      _
    $region29: #{tpu_custom_call.1} parent=1 // pred_fallthru
      _
    // Predicated region
    $region30: #{tpu_custom_call.1} parent=1 // pred_check
      _
    $region31: #{tpu_custom_call.1} parent=1 // pred_check_branch
      %79 = sbr.rel (0) target = $region33
    $region32: #{tpu_custom_call.1} parent=1 // pred_region
      %81 = dma.done [#allocation3], 256
    $region33: #{tpu_custom_call.1} parent=1 // pred_fallthru
      _
    // Predicated region
    $region34: #{tpu_custom_call.1} parent=1 // pred_check
      _
    $region35: #{tpu_custom_call.1} parent=1 // pred_check_branch
      %83 = sbr.rel (0) target = $region37
    $region36: #{tpu_custom_call.1} parent=1 // pred_region
      %85 = dma.done [#allocation6], 128
    $region37: #{tpu_custom_call.1} parent=1 // pred_fallthru
      _
    // Predicated region
    $region38: #{tpu_custom_call.1} parent=1 // pred_check
      _
    $region39: #{tpu_custom_call.1} parent=1 // pred_check_branch
      %87 = sbr.rel (0) target = $region41
    $region40: #{tpu_custom_call.1} parent=1 // pred_region
      %89 = dma.done [#allocation6], 1024
    $region41: #{tpu_custom_call.1} parent=1 // pred_fallthru
      _
    // Predicated region
    $region42: #{tpu_custom_call.1} parent=1 // pred_check
      _
    $region43: #{tpu_custom_call.1} parent=1 // pred_check_branch
      %91 = sbr.rel (0) target = $region45
    $region44: #{tpu_custom_call.1} parent=1 // pred_region
      %93 = dma.done [#allocation9], 1024
    $region45: #{tpu_custom_call.1} parent=1 // pred_fallthru
      _
    %v95 = vld [vmem:[#allocation2] sm:$0xff]
    %v96 = vld [vmem:[#allocation2 + $0x8] sm:$0xff]
    %v97 = vpack.c.bf16 %v96, %v95
    %v98 = vld [vmem:[#allocation5] sm:$0xf]
    %v99 = vld [vmem:[#allocation5 + $0x4] sm:$0xf]
    %v100 = vld [vmem:[%s2] sm:$0x1]
    %v102 = vperm.slane %v100, 0
    %v106 = vunpack.c.l.b16 %v98
    %v107 = vunpack.c.l.b16 %v99
    %v108 = vpack.c.b16 %v107, %v106
    %vm110 = vcmask 130048
    %v112 = vsel %vm110, %v97, 0
    %114 = vmatpush.bf16.msra.mxu0 0
    %115 = vmatpush.bf16.msra.mxu0 0
    %116 = vmatpush.bf16.msra.mxu0 0
    %117 = vmatpush.bf16.msra.mxu0 0
    %118 = vmatpush.bf16.msra.mxu0 0
    %119 = vmatpush.bf16.msra.mxu0 0
    %120 = vmatpush.bf16.msra.mxu0 0
    %121 = vmatpush.bf16.msra.mxu0 %v108
    %122 = vmatmul.bf16.gmra.mxu0 %v112
    %v123 = vpop.f32.mrf.mxu0
    %v124 = vadd.f32 %v102, %v123
    %v125 = vpop.f32.mrf.mxu0
    %v126 = vadd.f32 %v102, %v125
    %127 = vdwg.mxu0
    %v128 = vmax.f32 %v124, 0.0
    %v129 = vmax.f32 %v126, 0.0
    %v130 = vpack.c.bf16 %v128, %v128
    %v131 = vpack.c.bf16 %v129, %v129
    %vm132 = vcmask 257024
    %133 = vst.msk [vmem:[#allocation10] sm:$0xf] %vm132, %v130
    %134 = vst.msk [vmem:[#allocation10 + $0x4] sm:$0xf] %vm132, %v131
    %v135 = vpack.c.bf16 %v129, %v128
    %v136 = vld [vmem:[#allocation7] sm:$0xf]
    %v137 = vld [vmem:[#allocation7 + $0x4] sm:$0xf]
    %v138 = vld [vmem:[#allocation7 + $0x8] sm:$0xf]
    %v139 = vld [vmem:[#allocation7 + $0xc] sm:$0xf]
    %v140 = vld [vmem:[#allocation7 + $0x10] sm:$0xf]
    %v141 = vld [vmem:[#allocation7 + $0x14] sm:$0xf]
    %v142 = vld [vmem:[#allocation7 + $0x18] sm:$0xf]
    %v143 = vld [vmem:[#allocation7 + $0x1c] sm:$0xf]
    %v144 = vld [vmem:[#allocation7 + $0x20] sm:$0xf]
    %v145 = vld [vmem:[#allocation7 + $0x24] sm:$0xf]
    %v146 = vld [vmem:[#allocation7 + $0x28] sm:$0xf]
    %v147 = vld [vmem:[#allocation7 + $0x2c] sm:$0xf]
    %v148 = vld [vmem:[#allocation7 + $0x30] sm:$0xf]
    %v149 = vld [vmem:[#allocation7 + $0x34] sm:$0xf]
    %v150 = vld [vmem:[#allocation7 + $0x38] sm:$0xf]
    %v151 = vld [vmem:[#allocation7 + $0x3c] sm:$0xf]
    %v152 = vld [vmem:[%s4] sm:$0x1]
    %v154 = vperm.slane %v152, 0
    %v172 = vunpack.c.l.b16 %v136
    %v173 = vunpack.c.l.b16 %v137
    %v174 = vunpack.c.l.b16 %v138
    %v175 = vunpack.c.l.b16 %v139
    %v176 = vunpack.c.l.b16 %v140
    %v177 = vunpack.c.l.b16 %v141
    %v178 = vunpack.c.l.b16 %v142
    %v179 = vunpack.c.l.b16 %v143
    %v180 = vunpack.c.l.b16 %v144
    %v181 = vunpack.c.l.b16 %v145
    %v182 = vunpack.c.l.b16 %v146
    %v183 = vunpack.c.l.b16 %v147
    %v184 = vunpack.c.l.b16 %v148
    %v185 = vunpack.c.l.b16 %v149
    %v186 = vunpack.c.l.b16 %v150
    %v187 = vunpack.c.l.b16 %v151
    %v188 = vpack.c.b16 %v173, %v172
    %v189 = vpack.c.b16 %v175, %v174
    %v190 = vpack.c.b16 %v177, %v176
    %v191 = vpack.c.b16 %v179, %v178
    %v192 = vpack.c.b16 %v181, %v180
    %v193 = vpack.c.b16 %v183, %v182
    %v194 = vpack.c.b16 %v185, %v184
    %v195 = vpack.c.b16 %v187, %v186
    %204 = vmatpush.bf16.msra.mxu0 %v195
    %205 = vmatpush.bf16.msra.mxu0 %v194
    %206 = vmatpush.bf16.msra.mxu0 %v193
    %207 = vmatpush.bf16.msra.mxu0 %v192
    %208 = vmatpush.bf16.msra.mxu0 %v191
    %209 = vmatpush.bf16.msra.mxu0 %v190
    %210 = vmatpush.bf16.msra.mxu0 %v189
    %211 = vmatpush.bf16.msra.mxu0 %v188
    %212 = vmatmul.bf16.gmra.mxu0 %v135
    %v213 = vpop.f32.mrf.mxu0
    %v214 = vadd.f32 %v154, %v213
    %v215 = vpop.f32.mrf.mxu0
    %v216 = vadd.f32 %v154, %v215
    %217 = vdwg.mxu0
    %v218 = vmax.f32 %v214, 0.0
    %v219 = vmax.f32 %v216, 0.0
    %v220 = vpack.c.bf16 %v218, %v218
    %v221 = vpack.c.bf16 %v219, %v219
    %222 = vst.msk [vmem:[#allocation11] sm:$0xf] %vm132, %v220
    %223 = vst.msk [vmem:[#allocation11 + $0x4] sm:$0xf] %vm132, %v221
    %v224 = vpack.c.bf16 %v219, %v218
    %v225 = vld [vmem:[#allocation8] sm:$0xf]
    %v226 = vld [vmem:[#allocation8 + $0x4] sm:$0xf]
    %v227 = vld [vmem:[#allocation8 + $0x8] sm:$0xf]
    %v228 = vld [vmem:[#allocation8 + $0xc] sm:$0xf]
    %v229 = vld [vmem:[#allocation8 + $0x10] sm:$0xf]
    %v230 = vld [vmem:[#allocation8 + $0x14] sm:$0xf]
    %v231 = vld [vmem:[#allocation8 + $0x18] sm:$0xf]
    %v232 = vld [vmem:[#allocation8 + $0x1c] sm:$0xf]
    %v233 = vld [vmem:[#allocation8 + $0x20] sm:$0xf]
    %v234 = vld [vmem:[#allocation8 + $0x24] sm:$0xf]
    %v235 = vld [vmem:[#allocation8 + $0x28] sm:$0xf]
    %v236 = vld [vmem:[#allocation8 + $0x2c] sm:$0xf]
    %v237 = vld [vmem:[#allocation8 + $0x30] sm:$0xf]
    %v238 = vld [vmem:[#allocation8 + $0x34] sm:$0xf]
    %v239 = vld [vmem:[#allocation8 + $0x38] sm:$0xf]
    %v240 = vld [vmem:[#allocation8 + $0x3c] sm:$0xf]
    %v241 = vld [vmem:[%s6] sm:$0x1]
    %v243 = vperm.slane %v241, 0
    %v261 = vunpack.c.l.b16 %v225
    %v262 = vunpack.c.l.b16 %v226
    %v263 = vunpack.c.l.b16 %v227
    %v264 = vunpack.c.l.b16 %v228
    %v265 = vunpack.c.l.b16 %v229
    %v266 = vunpack.c.l.b16 %v230
    %v267 = vunpack.c.l.b16 %v231
    %v268 = vunpack.c.l.b16 %v232
    %v269 = vunpack.c.l.b16 %v233
    %v270 = vunpack.c.l.b16 %v234
    %v271 = vunpack.c.l.b16 %v235
    %v272 = vunpack.c.l.b16 %v236
    %v273 = vunpack.c.l.b16 %v237
    %v274 = vunpack.c.l.b16 %v238
    %v275 = vunpack.c.l.b16 %v239
    %v276 = vunpack.c.l.b16 %v240
    %v277 = vpack.c.b16 %v262, %v261
    %v278 = vpack.c.b16 %v264, %v263
    %v279 = vpack.c.b16 %v266, %v265
    %v280 = vpack.c.b16 %v268, %v267
    %v281 = vpack.c.b16 %v270, %v269
    %v282 = vpack.c.b16 %v272, %v271
    %v283 = vpack.c.b16 %v274, %v273
    %v284 = vpack.c.b16 %v276, %v275
    %293 = vmatpush.bf16.msra.mxu0 %v284
    %294 = vmatpush.bf16.msra.mxu0 %v283
    %295 = vmatpush.bf16.msra.mxu0 %v282
    %296 = vmatpush.bf16.msra.mxu0 %v281
    %297 = vmatpush.bf16.msra.mxu0 %v280
    %298 = vmatpush.bf16.msra.mxu0 %v279
    %299 = vmatpush.bf16.msra.mxu0 %v278
    %300 = vmatpush.bf16.msra.mxu0 %v277
    %301 = vmatmul.bf16.gmra.mxu0 %v224
    %v302 = vpop.f32.mrf.mxu0
    %v303 = vadd.f32 %v243, %v302
    %v304 = vpop.f32.mrf.mxu0
    %v305 = vadd.f32 %v243, %v304
    %306 = vdwg.mxu0
    %307 = vst [vmem:[#allocation13] sm:$0xff] %v303
    %308 = vst [vmem:[#allocation13 + $0x8] sm:$0xff] %v305
    // Predicated region
    $region46: #{tpu_custom_call.1} parent=1 // pred_check
      _
    $region47: #{tpu_custom_call.1} parent=1 // pred_check_branch
      %310 = sbr.rel (0) target = $region49
    $region48: #{tpu_custom_call.1} parent=1 // pred_region
      %312 = vsyncadd [#allocation4], 0
      %s313 = sshll.u32 [#allocation10], 4
      %s314 = int_to_ptr.vmem [resolvable:$true] %s313
      %s315 = sshll.u32 %s7, 4
      %s316 = int_to_ptr.hbm [resolvable:$true] %s315
      %321 = dma.vmem_to_hbm [thread:$0]  %s314, 128, %s316, [#allocation4], 64, 64, 4
    $region49: #{tpu_custom_call.1} parent=1 // pred_fallthru
      _
    // Predicated region
    $region50: #{tpu_custom_call.1} parent=1 // pred_check
      _
    $region51: #{tpu_custom_call.1} parent=1 // pred_check_branch
      %323 = sbr.rel (0) target = $region53
    $region52: #{tpu_custom_call.1} parent=1 // pred_region
      %325 = vsyncadd [#allocation12], 0
      %s326 = sshll.u32 [#allocation11], 4
      %s327 = int_to_ptr.vmem [resolvable:$true] %s326
      %s328 = sshll.u32 %s8, 4
      %s329 = int_to_ptr.hbm [resolvable:$true] %s328
      %334 = dma.vmem_to_hbm [thread:$0]  %s327, 128, %s329, [#allocation12], 64, 64, 4
    $region53: #{tpu_custom_call.1} parent=1 // pred_fallthru
      _
    // Predicated region
    $region54: #{tpu_custom_call.1} parent=1 // pred_check
      _
    $region55: #{tpu_custom_call.1} parent=1 // pred_check_branch
      %336 = sbr.rel (0) target = $region57
    $region56: #{tpu_custom_call.1} parent=1 // pred_region
      %338 = vsyncadd [#allocation12], 0
      %s339 = sshll.u32 [#allocation13], 4
      %s340 = int_to_ptr.vmem [resolvable:$true] %s339
      %s341 = sshll.u32 %s9, 4
      %s342 = int_to_ptr.hbm [resolvable:$true] %s341
      %347 = dma.vmem_to_hbm [thread:$0]  %s340, 256, %s342, [#allocation12], 128, 128, 8
    $region57: #{tpu_custom_call.1} parent=1 // pred_fallthru
      _
    // Predicated region
    $region58: #{tpu_custom_call.1} parent=1 // pred_check
      _
    $region59: #{tpu_custom_call.1} parent=1 // pred_check_branch
      %349 = sbr.rel (0) target = $region61
    $region60: #{tpu_custom_call.1} parent=1 // pred_region
      %351 = dma.done [#allocation4], 128
    $region61: #{tpu_custom_call.1} parent=1 // pred_fallthru
      _
    // Predicated region
    $region62: #{tpu_custom_call.1} parent=1 // pred_check
      _
    $region63: #{tpu_custom_call.1} parent=1 // pred_check_branch
      %353 = sbr.rel (0) target = $region65
    $region64: #{tpu_custom_call.1} parent=1 // pred_region
      %355 = dma.done [#allocation12], 128
    $region65: #{tpu_custom_call.1} parent=1 // pred_fallthru
      _
    // Predicated region
    $region66: #{tpu_custom_call.1} parent=1 // pred_check
      _
    $region67: #{tpu_custom_call.1} parent=1 // pred_check_branch
      %357 = sbr.rel (0) target = $region69
    $region68: #{tpu_custom_call.1} parent=1 // pred_region
      %359 = dma.done [#allocation12], 256
    $region69: #{tpu_custom_call.1} parent=1 // pred_fallthru
      _
    %360 = vsyncpa [#allocation3], 1
    %361 = vsyncpa [#allocation6], 1
    %362 = vsyncpa [#allocation9], 1
    %363 = vsyncpa [#allocation4], 1
    %364 = vsyncpa [#allocation12], 1

</llo_original>
